<compile_context>
chip_gen: v7x
topology: tpu7x:2x2x1
jax: 0.10.0
libtpu: 0.0.40
codegen_flags: <defaults>
</compile_context>

<pallas_src>
import functools
import math

import jax
import jax.numpy as jnp
from jax.experimental import pallas as pl
from jax.experimental.pallas import tpu as pltpu

_MASK_VALUE = -9000000000000000.0  # same constant as the PyTorch module


def _round_up(v, m):
    return (v + m - 1) // m * m


def _project_kernel(x_ref, w_ref, h_ref, *, mxu_dtype):
    """h = x @ W (lane-padded); stored in mxu_dtype (bf16 by default)."""
    x = x_ref[...].astype(mxu_dtype)
    h = jnp.dot(x, w_ref[...], preferred_element_type=jnp.float32)
    h_ref[...] = h.astype(h_ref.dtype)


def _attn_kernel(f1_ref, f2t_ref, adj_ref, h_ref, out_ref, m_sc, l_sc,
                 *, alpha, mxu_dtype):
    """Flash-style softmax_j(mask(adj, leakyrelu(f1_i + f2_j))) @ h.

    The output block is resident across the key ("arbitrary") axis, so it is
    used directly as the f32 accumulator (no separate acc scratch)."""
    j = pl.program_id(1)

    @pl.when(j == 0)
    def _init():
        m_sc[...] = jnp.full_like(m_sc, -jnp.inf)
        l_sc[...] = jnp.zeros_like(l_sc)
        out_ref[...] = jnp.zeros_like(out_ref)

    # e[i, k] = leakyrelu(f1[i] + f2[k]); (tq,1)+(1,tk) broadcast — no transposes,
    # no 1-wide MXU dots.
    e = f1_ref[...] + f2t_ref[...]
    e = jnp.where(e > 0, e, alpha * e)
    e = jnp.where(adj_ref[...] > 0, e, _MASK_VALUE)

    m_prev = m_sc[...]
    m_new = jnp.maximum(m_prev, jnp.max(e, axis=1, keepdims=True))
    scale = jnp.exp(m_prev - m_new)
    p = jnp.exp(e - m_new)
    l_sc[...] = scale * l_sc[...] + jnp.sum(p, axis=1, keepdims=True)
    # p cast to bf16 for the MXU accumulate (operands bf16, accumulation f32).
    out_ref[...] = scale * out_ref[...] + jnp.dot(
        p.astype(mxu_dtype), h_ref[...], preferred_element_type=jnp.float32)
    m_sc[...] = m_new

    @pl.when(j == pl.num_programs(1) - 1)
    def _finalize():
        l = l_sc[...]
        r = pl.reciprocal(l, approx=True)   # EUP slot
        r = r * (2.0 - l * r)               # one Newton step -> ~f32 accuracy
        hp = out_ref[...] * r
        # ELU (concat=True branch); min() keeps the discarded exp branch finite.
        out_ref[...] = jnp.where(hp > 0, hp, jnp.exp(jnp.minimum(hp, 0.0)) - 1.0)


def rwr_layer(x, W, a, adj, *, alpha=0.2, block_q=512, block_k=1024,
              mxu_dtype=jnp.bfloat16, vmem_limit_bytes=48 * 1024 * 1024,
              core_parallel_rows=False, key_buffers=2):
    """Pallas implementation of RWRLayer.forward (concat=True, eval mode).

    adj may be float (any), bool or int8; pass int8/bool to keep the f32->int8
    conversion off the hot path for large graphs.
    Set core_parallel_rows=True on v7x (2 TCs/chip) to shard the row axis
    across TensorCores; set key_buffers=3 if a profile shows exposed DMA.
    """
    N, f_in = x.shape
    f_out = W.shape[1]
    assert a.shape == (2 * f_out, 1)
    assert block_q % 128 == 0 and block_k % 128 == 0

    # Lane-dense feature dim (avoid masked partial stores) and 128-aligned node dim.
    f_pad = _round_up(max(f_out, 128), 128)
    n128 = _round_up(N, 128)
    tq = min(block_q, n128)
    tk = min(block_k, n128)
    tk = max(tq, (tk // tq) * tq)       # tk % tq == 0  ->  node padding bounded by tk
    n_pad = _round_up(N, tk)            # divisible by both tq and tk

    x32 = x.astype(jnp.float32)
    x_p = jnp.pad(x32, ((0, n_pad - N), (0, 0)))
    W_p = jnp.pad(W.astype(mxu_dtype), ((0, 0), (0, f_pad - f_out)))

    # Logit features: f = x @ (W @ [a1 | a2]). Tiny (N,f_in)x(f_in,2) GEMV — done
    # in plain XLA so pass 1 has a single lane-dense output (no 2-wide vst.msk).
    Wa = W.astype(jnp.float32) @ a.astype(jnp.float32).reshape(2, f_out).T  # (f_in, 2)
    f = x32 @ Wa                                                            # (N, 2)
    f1 = jnp.pad(f[:, 0:1], ((0, n_pad - N), (0, 0)))       # (n_pad, 1) query term
    f2t = jnp.pad(f[:, 1:2].T, ((0, 0), (0, n_pad - N)))    # (1, n_pad) key term, lane-major

    # adj streamed as int8 {0,1}: cuts the only O(N^2) HBM stream 4x vs f32.
    if adj.dtype == jnp.int8 or adj.dtype == jnp.bool_:
        adj_i8 = adj.astype(jnp.int8)
    else:
        adj_i8 = (adj > 0).astype(jnp.int8)
    adj_p = jnp.pad(adj_i8, ((0, n_pad - N), (0, n_pad - N)))

    if core_parallel_rows:
        proj_sem = (pltpu.CORE_PARALLEL,)
        attn_sem = (pltpu.CORE_PARALLEL, pltpu.ARBITRARY)
    else:
        proj_sem = ("parallel",)
        attn_sem = ("parallel", "arbitrary")

    cparams_proj = pltpu.CompilerParams(
        dimension_semantics=proj_sem, vmem_limit_bytes=vmem_limit_bytes)
    cparams_attn = pltpu.CompilerParams(
        dimension_semantics=attn_sem, vmem_limit_bytes=vmem_limit_bytes)

    def _key_spec(shape, index_map):
        # Optional deeper pipelining for the bursty int8 adj / bf16 h streams.
        if key_buffers > 2:
            return pl.BlockSpec(shape, index_map, pipeline_mode=pl.Buffered(key_buffers))
        return pl.BlockSpec(shape, index_map)

    # ---- Pass 1: projection (h computed once, stored bf16, never per adj tile) --
    h = pl.pallas_call(
        functools.partial(_project_kernel, mxu_dtype=mxu_dtype),
        out_shape=jax.ShapeDtypeStruct((n_pad, f_pad), mxu_dtype),
        grid_spec=pltpu.PrefetchScalarGridSpec(
            num_scalar_prefetch=0,
            grid=(n_pad // tq,),
            in_specs=[
                pl.BlockSpec((tq, f_in), lambda i: (i, 0)),
                pl.BlockSpec((f_in, f_pad), lambda i: (0, 0)),
            ],
            out_specs=pl.BlockSpec((tq, f_pad), lambda i: (i, 0))),
        compiler_params=cparams_proj,
    )(x_p, W_p)

    # ---- Pass 2: tiled masked-softmax attention (online softmax) ---------------
    out_p = pl.pallas_call(
        functools.partial(_attn_kernel, alpha=alpha, mxu_dtype=mxu_dtype),
        out_shape=jax.ShapeDtypeStruct((n_pad, f_pad), jnp.float32),
        grid_spec=pltpu.PrefetchScalarGridSpec(
            num_scalar_prefetch=0,
            grid=(n_pad // tq, n_pad // tk),
            in_specs=[
                pl.BlockSpec((tq, 1), lambda i, j: (i, 0)),      # f1 (query term)
                pl.BlockSpec((1, tk), lambda i, j: (0, j)),      # f2 (key term, row-major)
                _key_spec((tq, tk), lambda i, j: (i, j)),        # adj int8 tile
                _key_spec((tk, f_pad), lambda i, j: (j, 0)),     # h key tile (bf16)
            ],
            out_specs=pl.BlockSpec((tq, f_pad), lambda i, j: (i, 0)),
            scratch_shapes=[
                pltpu.VMEM((tq, 1), jnp.float32),   # running max
                pltpu.VMEM((tq, 1), jnp.float32),   # running sum
            ]),
        compiler_params=cparams_attn,
    )(f1, f2t, adj_p, h)

    return out_p[:N, :f_out]


def _reference(x, W, a, adj, alpha):
    """Pure-JAX reference mirroring the PyTorch forward (concat=True, eval)."""
    h = x @ W
    out_f = W.shape[1]
    f1 = h @ a[:out_f]
    f2 = h @ a[out_f:]
    e = f1 + f2.T
    e = jnp.where(e > 0, e, alpha * e)
    att = jnp.where(adj > 0, e, jnp.full_like(e, _MASK_VALUE))
    att = jax.nn.softmax(att, axis=1)
    hp = att @ h
    return jnp.where(hp > 0, hp, jnp.exp(jnp.minimum(hp, 0.0)) - 1.0)


def _make_inputs(key, N, in_features, out_features):
    k_x, k_w, k_a, k_adj = jax.random.split(key, 4)
    gain = 1.414
    bw = gain * math.sqrt(6.0 / (in_features + out_features))
    W = jax.random.uniform(k_w, (in_features, out_features), jnp.float32, -bw, bw)
    ba = gain * math.sqrt(6.0 / (2 * out_features + 1))
    a = jax.random.uniform(k_a, (2 * out_features, 1), jnp.float32, -ba, ba)
    x = jax.random.normal(k_x, (N, in_features), dtype=jnp.float32)
    # Random symmetric-ish adjacency with self-loops (every row has >= 1 edge).
    adj = (jax.random.uniform(k_adj, (N, N)) > 0.5).astype(jnp.float32)
    adj = jnp.clip(adj + adj.T + jnp.eye(N, dtype=jnp.float32), 0.0, 1.0)
    return x, W, a, adj


if __name__ == "__main__":
    key = jax.random.PRNGKey(0)
    alpha = 0.2
    in_features, out_features = 16, 32

    # Multi-tile graph (exercises online-softmax accumulation across key tiles
    # and the parallel row axis). 300 -> padded to 384 with 128/128 tiles.
    x, W, a, adj = _make_inputs(key, 300, in_features, out_features)
    adj_i8 = (adj > 0).astype(jnp.int8)   # hoisted off the kernel's timed path
    ref = _reference(x, W, a, adj, alpha)

    # Case 1: f32 MXU path, grid (3, 3). Newton-refined reciprocal -> tight tol.
    out_f32 = rwr_layer(x, W, a, adj_i8, alpha=alpha, block_q=128, block_k=128,
                        mxu_dtype=jnp.float32)
    jax.block_until_ready(out_f32)
    assert out_f32.shape == (300, out_features)
    assert jnp.allclose(out_f32, ref, atol=1e-3, rtol=1e-3), "f32 multi-tile mismatch"

    # Case 1b: default bf16 MXU path (h and p operands in bf16, softmax math in
    # f32); tk is a strict multiple of tq so padding stays bounded by tk.
    out_bf16 = rwr_layer(x, W, a, adj_i8, alpha=alpha, block_q=128, block_k=256)
    jax.block_until_ready(out_bf16)
    assert jnp.allclose(out_bf16, ref, atol=5e-2, rtol=5e-2), "bf16 mismatch"

    # Case 2: tiny graph with the (large) default tiles — tiles clamp to 128 and
    # the f32 adjacency is converted inside the wrapper.
    x2, W2, a2, adj2 = _make_inputs(jax.random.PRNGKey(1), 8, in_features, out_features)
    out2 = rwr_layer(x2, W2, a2, adj2, alpha=alpha)
    jax.block_until_ready(out2)
    ref2 = _reference(x2, W2, a2, adj2, alpha)
    assert out2.shape == (8, out_features)
    assert jnp.allclose(out2, ref2, atol=5e-2, rtol=5e-2), "tiny-graph mismatch"

    print("KERNEL_OK")
</pallas_src>

<mosaic_0001>
module attributes {stable_mosaic.version = 11 : i64} {
  func.func @_project_kernel(%arg0: i32, %arg1: memref<128x16xf32, #tpu.memory_space<vmem>>, %arg2: memref<16x128xf32, #tpu.memory_space<vmem>>, %arg3: memref<128x128xf32, #tpu.memory_space<vmem>>) attributes {dimension_semantics = [#tpu.dimension_semantics<parallel>], iteration_bounds = array<i64: 3>, scalar_prefetch = 0 : i64, scratch_operands = 0 : i64, tpu.core_type = #tpu.core_type<tc>, window_params = [{transform_indices = @transform_0, window_bounds = array<i64: 128, 16>}, {pipeline_mode = #tpu.pipeline_mode<synchronous>, transform_indices = @transform_1, window_bounds = array<i64: 16, 128>}, {transform_indices = @transform_2, window_bounds = array<i64: 128, 128>}]} {
    %c0 = arith.constant 0 : index
    %c0_0 = arith.constant 0 : index
    %0 = vector.load %arg1[%c0, %c0_0] : memref<128x16xf32, #tpu.memory_space<vmem>>, vector<128x16xf32>
    %c0_1 = arith.constant 0 : index
    %c0_2 = arith.constant 0 : index
    %1 = vector.load %arg2[%c0_1, %c0_2] : memref<16x128xf32, #tpu.memory_space<vmem>>, vector<16x128xf32>
    %cst = arith.constant dense<0.000000e+00> : vector<128x128xf32>
    %2 = tpu.matmul %0, %1, %cst {dimension_numbers = #tpu.dot_dimension_numbers<[1], [0], [0], [1], [0, 0, 1, 1], [], []>} : vector<128x16xf32>, vector<16x128xf32>, vector<128x128xf32> -> vector<128x128xf32>
    %c0_3 = arith.constant 0 : index
    %c0_4 = arith.constant 0 : index
    %3 = vector.load %arg3[%c0_3, %c0_4] : memref<128x128xf32, #tpu.memory_space<vmem>>, vector<128x128xf32>
    tpu.vector_store %arg3[%c0_3, %c0_4], %2 {strides = array<i32>} : memref<128x128xf32, #tpu.memory_space<vmem>>, vector<128x128xf32>,
    return
  }
  func.func @transform_0(%arg0: i32) -> (i32, i32) {
    %c0_i32 = arith.constant 0 : i32
    %c0_i32_0 = arith.constant 0 : i32
    return %arg0, %c0_i32 : i32, i32
  }
  func.func @transform_1(%arg0: i32) -> (i32, i32) {
    %c0_i32 = arith.constant 0 : i32
    %c0_i32_0 = arith.constant 0 : i32
    %c0_i32_1 = arith.constant 0 : i32
    return %c0_i32, %c0_i32_0 : i32, i32
  }
  func.func @transform_2(%arg0: i32) -> (i32, i32) {
    %c0_i32 = arith.constant 0 : i32
    %c0_i32_0 = arith.constant 0 : i32
    return %arg0, %c0_i32 : i32, i32
  }
}

</mosaic_0001>

<llo_original>
// kernel: tpu_custom_call.1
$region0: #{tpu_custom_call.1}
  #allocation0 [shape = 'u32[]', space=smem, size = 0x4, offset = 0x4, fixed_abs, tag = 'smem constant byte address 0x4 - core index']
  #allocation1 [shape = 'u32[144,128]{1,0:T(1,128)}', space=vmem, size = 0x12000, scoped, tag = 'internal scratch']
  %s0 = inlined_call_operand.vmem [shape: f32[384,16], index: 0, kind: input, shape index: {}]
  %s1 = inlined_call_operand.vmem [shape: f32[16,128], index: 1, kind: input, shape index: {}]
  %s2 = inlined_call_operand.hbm [shape: f32[384,128], index: 2, kind: output, shape index: {}]
  %s3 = sld [smem:[#allocation0]]
  $region41: #{tpu_custom_call.1} parent=0
    _
  %s5 = ssub.s32 1, %s3
  %s6 = scalar_select 0, %s5, %s3
  $region1: #{tpu_custom_call.1} parent=0
    #allocation2 [shape = 'u8[131072]{0}', space=vmem, size = 0x20000, scoped, tag = 'output window, operand 0']
    #allocation3 [shape = 's32[2]{0}', space=sflag, size = 0x8, scoped, tag = 'scoped memory for tpu_custom_call.1']
    %7 = vsyncpa [#allocation3], 0
    %s8 = scalar_lea.sflag [#allocation3], 1
    %9 = vsyncpa %s8, 0
    loop: start=0, step=1, limit=5
    $region2: #{tpu_custom_call.1} parent=1 // loop_pre_header
      _
    $region3: #{tpu_custom_call.1} parent=1 // loop_header
      %s11 = sphi 0, %s15
      %p12 = scmp.ge.s32.totalorder %s11, 5
      %s21 = sphi 0, %s23
      %s24 = sphi 0, %s21
      %s25 = sphi 0, %s24
      %s41 = sphi 0, %s25
      %s45 = sphi 0, %s45
      %s47 = sphi 0, %s45
      %s48 = sphi 0, %s47
      %s62 = sphi 0, %s48
      %s68 = sphi 0, %s70
      %s71 = sphi 0, %s68
      %s72 = sphi 0, %s71
      %s88 = sphi 0, %s72
    $region4: #{tpu_custom_call.1} parent=1 // loop_header_branch
      %14 = sbr.rel (%p12) target = $region8
    $region5: #{tpu_custom_call.1} parent=1 // loop_body
      %s16 = ssub.s32 %s11, 1
      %s17 = ssub.s32 %s11, 2
      %s18 = sadd.s32 %s11, 1
      %s19 = ssub.s32 %s11, %s18
      %p20 = scmp.eq.s32.totalorder %s19, 0
      %s22 = sadd.s32 %s21, 1
      %s23 = scalar_select %p20, %s21, %s22
      %p26 = pneg %p20
      %p27 = scmp.eq.s32.totalorder %s11, 2
      %p28 = por %p26, %p27
      %p29 = scmp.ne.s32.totalorder %s21, %s24
      %p30 = scmp.eq.s32.totalorder %s11, 0
      %p31 = por %p29, %p30
      %p32 = scmp.ne.s32.totalorder %s21, %s24
      %p33 = scmp.eq.s32.totalorder %s16, 2
      %p34 = por %p32, %p33
      %p35 = scmp.ne.s32.totalorder %s24, %s25
      %p36 = scmp.eq.s32.totalorder %s16, 0
      %p37 = por %p35, %p36
      %p38 = scmp.ne.s32.totalorder %s24, %s25
      %p39 = scmp.eq.s32.totalorder %s17, 2
      %p40 = por %p38, %p39
      %p42 = scmp.ne.s32.totalorder %s25, %s41
      %p43 = scmp.eq.s32.totalorder %s17, 0
      %p44 = por %p42, %p43
      %s46 = sadd.s32 %s45, 1
      %p49 = scmp.eq.s32.totalorder %s11, 2
      %p50 = scmp.ne.s32.totalorder %s45, %s47
      %p51 = scmp.eq.s32.totalorder %s11, 0
      %p52 = por %p50, %p51
      %p53 = scmp.ne.s32.totalorder %s45, %s47
      %p54 = scmp.eq.s32.totalorder %s16, 2
      %p55 = por %p53, %p54
      %p56 = scmp.ne.s32.totalorder %s47, %s48
      %p57 = scmp.eq.s32.totalorder %s16, 0
      %p58 = por %p56, %p57
      %p59 = scmp.ne.s32.totalorder %s47, %s48
      %p60 = scmp.eq.s32.totalorder %s17, 2
      %p61 = por %p59, %p60
      %p63 = scmp.ne.s32.totalorder %s48, %s62
      %p64 = scmp.eq.s32.totalorder %s17, 0
      %p65 = por %p63, %p64
      %s66 = ssub.s32 %s11, %s18
      %p67 = scmp.eq.s32.totalorder %s66, 0
      %s69 = sadd.s32 %s68, 1
      %s70 = scalar_select %p67, %s68, %s69
      %p73 = pneg %p67
      %p74 = scmp.eq.s32.totalorder %s11, 2
      %p75 = por %p73, %p74
      %p76 = scmp.ne.s32.totalorder %s68, %s71
      %p77 = scmp.eq.s32.totalorder %s11, 0
      %p78 = por %p76, %p77
      %p79 = scmp.ne.s32.totalorder %s68, %s71
      %p80 = scmp.eq.s32.totalorder %s16, 2
      %p81 = por %p79, %p80
      %p82 = scmp.ne.s32.totalorder %s71, %s72
      %p83 = scmp.eq.s32.totalorder %s16, 0
      %p84 = por %p82, %p83
      %p85 = scmp.ne.s32.totalorder %s71, %s72
      %p86 = scmp.eq.s32.totalorder %s17, 2
      %p87 = por %p85, %p86
      %p89 = scmp.ne.s32.totalorder %s72, %s88
      %p90 = scmp.eq.s32.totalorder %s17, 0
      %p91 = por %p89, %p90
      %p92 = scmp.le.s32.totalorder 1, %s11
      %p93 = scmp.lt.s32.totalorder %s11, 4
      %p94 = pnand %p92, %p93
      %p95 = pneg %p94
      // Predicated region
      $region9: #{tpu_custom_call.1} parent=5 // pred_check
        _
      $region10: #{tpu_custom_call.1} parent=5 // pred_check_branch
        %97 = sbr.rel (%p94) target = $region12
      $region11: #{tpu_custom_call.1} parent=5 // pred_region
        %s98 = ssub.s32 %s11, 1
        // Predicated region
        $region13: #{tpu_custom_call.1} parent=11 // pred_check
          %p99 = pneg %p58
        $region14: #{tpu_custom_call.1} parent=11 // pred_check_branch
          %101 = sbr.rel (%p99) target = $region16
        $region15: #{tpu_custom_call.1} parent=11 // pred_region
          _
        $region16: #{tpu_custom_call.1} parent=11 // pred_fallthru
          _
      $region12: #{tpu_custom_call.1} parent=5 // pred_fallthru
        _
      %p102 = scmp.lt.s32.totalorder %s11, 3
      // Predicated region
      $region17: #{tpu_custom_call.1} parent=5 // pred_check
        %p103 = pneg %p102
      $region18: #{tpu_custom_call.1} parent=5 // pred_check_branch
        %105 = sbr.rel (%p103) target = $region20
      $region19: #{tpu_custom_call.1} parent=5 // pred_region
        // Predicated region
        $region21: #{tpu_custom_call.1} parent=19 // pred_check
          %p106 = pneg %p31
        $region22: #{tpu_custom_call.1} parent=19 // pred_check_branch
          %108 = sbr.rel (%p106) target = $region24
        $region23: #{tpu_custom_call.1} parent=19 // pred_region
          %s109 = smul.u32 16, %s11
          %p110 = scmp.lt.s32.totalorder %s109, 47
          %s111 = scalar_select %p110, %s109, 47
          %s112 = smul.addr %s111, 8
          %s113 = scalar_lea.vmem %s0, %s112
          %s114 = smul.u32 16, %s11
        $region24: #{tpu_custom_call.1} parent=19 // pred_fallthru
          _
      $region20: #{tpu_custom_call.1} parent=5 // pred_fallthru
        _
      %p115 = scmp.le.s32.totalorder 1, %s11
      %p116 = scmp.lt.s32.totalorder %s11, 4
      %p117 = pnand %p115, %p116
      %p118 = pneg %p117
      // Predicated region
      $region25: #{tpu_custom_call.1} parent=5 // pred_check
        _
      $region26: #{tpu_custom_call.1} parent=5 // pred_check_branch
        %120 = sbr.rel (%p117) target = $region28
      $region27: #{tpu_custom_call.1} parent=5 // pred_region
        %s121 = ssub.s32 %s11, 1
        %s122 = smul.u32 16, %s16
        %p123 = scmp.lt.s32.totalorder %s122, 47
        %s124 = scalar_select %p123, %s122, 47
        %s125 = smul.addr %s124, 8
        %s126 = scalar_lea.vmem %s0, %s125
        %p127 = pneg %p37
        %p128 = pneg %p34
        %p129 = pneg %p58
        %p130 = pneg %p55
        %p131 = pneg %p84
        %p132 = pneg %p81
        %s133 = sand.u32 %s71, 1
        %s134 = scalar_lea.sflag [#allocation3], %s133
        %s135 = sand.u32 %s71, 1
        %s136 = smul.addr %s135, 128
        %s137 = scalar_lea.vmem [#allocation2], %s136
        %s138 = smul.u32 16, %s16
        %p139 = scmp.lt.s32.totalorder %s138, 47
        %s140 = scalar_select %p139, %s138, 47
        %s141 = smul.addr %s140, 8
        %s142 = scalar_lea.vmem %s0, %s141
        %s143 = smul.u32 16, %s16
        %s144 = smul.u32 16, %s16
        %v145 = vld [vmem:[%s142] sm:$0xff]
        %v146 = vld [vmem:[%s142 + $0x8] sm:$0xff]
        %v147 = vld [vmem:[%s142 + $0x10] sm:$0xff]
        %v148 = vld [vmem:[%s142 + $0x18] sm:$0xff]
        %v149 = vld [vmem:[%s142 + $0x20] sm:$0xff]
        %v150 = vld [vmem:[%s142 + $0x28] sm:$0xff]
        %v151 = vld [vmem:[%s142 + $0x30] sm:$0xff]
        %v152 = vld [vmem:[%s142 + $0x38] sm:$0xff]
        %v153 = vld [vmem:[%s142 + $0x40] sm:$0xff]
        %v154 = vld [vmem:[%s142 + $0x48] sm:$0xff]
        %v155 = vld [vmem:[%s142 + $0x50] sm:$0xff]
        %v156 = vld [vmem:[%s142 + $0x58] sm:$0xff]
        %v157 = vld [vmem:[%s142 + $0x60] sm:$0xff]
        %v158 = vld [vmem:[%s142 + $0x68] sm:$0xff]
        %v159 = vld [vmem:[%s142 + $0x70] sm:$0xff]
        %v160 = vld [vmem:[%s142 + $0x78] sm:$0xff]
        %v161 = vld [vmem:[%s1] sm:$0xff]
        %v162 = vld [vmem:[%s1 + $0x8] sm:$0xff]
        %vm163 = vcmask 130048
        %v165 = vsel %vm163, %v145, 0
        %v168 = vsel %vm163, %v146, 0
        %v171 = vsel %vm163, %v147, 0
        %v174 = vsel %vm163, %v148, 0
        %v177 = vsel %vm163, %v149, 0
        %v180 = vsel %vm163, %v150, 0
        %v183 = vsel %vm163, %v151, 0
        %v186 = vsel %vm163, %v152, 0
        %v189 = vsel %vm163, %v153, 0
        %v192 = vsel %vm163, %v154, 0
        %v195 = vsel %vm163, %v155, 0
        %v198 = vsel %vm163, %v156, 0
        %v201 = vsel %vm163, %v157, 0
        %v204 = vsel %vm163, %v158, 0
        %v207 = vsel %vm163, %v159, 0
        %v210 = vsel %vm163, %v160, 0
        %212 = vmatprep.subr.mxu0 0.0
        %213 = vmatpush1.msra.mxu0 %v161
        %214 = vmatprep.subr.mxu0 0.0
        %215 = vmatpush1.msra.mxu0 %v162
        %216 = vmatprep.subr.mxu0 0.0
        %217 = vmatpush1.msra.mxu0 0.0
        %218 = vmatprep.subr.mxu0 0.0
        %219 = vmatpush1.msra.mxu0 0.0
        %220 = vmatprep.subr.mxu0 0.0
        %221 = vmatpush1.msra.mxu0 0.0
        %222 = vmatprep.subr.mxu0 0.0
        %223 = vmatpush1.msra.mxu0 0.0
        %224 = vmatprep.subr.mxu0 0.0
        %225 = vmatpush1.msra.mxu0 0.0
        %226 = vmatprep.subr.mxu0 0.0
        %227 = vmatpush1.msra.mxu0 0.0
        %228 = vmatprep.subr.mxu0 0.0
        %229 = vmatpush1.msra.mxu0 0.0
        %230 = vmatprep.subr.mxu0 0.0
        %231 = vmatpush1.msra.mxu0 0.0
        %232 = vmatprep.subr.mxu0 0.0
        %233 = vmatpush1.msra.mxu0 0.0
        %234 = vmatprep.subr.mxu0 0.0
        %235 = vmatpush1.msra.mxu0 0.0
        %236 = vmatprep.subr.mxu0 0.0
        %237 = vmatpush1.msra.mxu0 0.0
        %238 = vmatprep.subr.mxu0 0.0
        %239 = vmatpush1.msra.mxu0 0.0
        %240 = vmatprep.subr.mxu0 0.0
        %241 = vmatpush1.msra.mxu0 0.0
        %242 = vmatprep.subr.mxu0 0.0
        %243 = vmatpush1.msra.mxu0 0.0
        %244 = vmatprep.subr.mxu0 0.0
        %245 = vmatpush1.msra.mxu0 0.0
        %246 = vmatprep.subr.mxu0 0.0
        %247 = vmatpush1.msra.mxu0 0.0
        %248 = vmatprep.subr.mxu0 0.0
        %249 = vmatpush1.msra.mxu0 0.0
        %250 = vmatprep.subr.mxu0 0.0
        %251 = vmatpush1.msra.mxu0 0.0
        %252 = vmatprep.subr.mxu0 0.0
        %253 = vmatpush1.msra.mxu0 0.0
        %254 = vmatprep.subr.mxu0 0.0
        %255 = vmatpush1.msra.mxu0 0.0
        %256 = vmatprep.subr.mxu0 0.0
        %257 = vmatpush1.msra.mxu0 0.0
        %258 = vmatprep.subr.mxu0 0.0
        %259 = vmatpush1.msra.mxu0 0.0
        %260 = vmatprep.subr.mxu0 0.0
        %261 = vmatpush1.msra.mxu0 0.0
        %262 = vmatprep.subr.mxu0 0.0
        %263 = vmatpush1.msra.mxu0 0.0
        %264 = vmatprep.subr.mxu0 0.0
        %265 = vmatpush1.msra.mxu0 0.0
        %266 = vmatprep.subr.mxu0 0.0
        %267 = vmatpush1.msra.mxu0 0.0
        %268 = vmatprep.subr.mxu0 0.0
        %269 = vmatpush1.msra.mxu0 0.0
        %270 = vmatprep.subr.mxu0 0.0
        %271 = vmatpush1.msra.mxu0 0.0
        %272 = vmatprep.subr.mxu0 0.0
        %273 = vmatpush1.msra.mxu0 0.0
        %274 = vmatprep.subr.mxu0 0.0
        %275 = vmatpush1.msra.mxu0 0.0
        %276 = vmatprep.mubr.f32.mxu0 0.0
        %277 = vmatmul.mubr.f32.gmra.mrb[0].mxu0 %v165
        %v278 = vpop.f32.mrb[0].mxu0
        %v279 = vadd.f32 0.0, %v278
        %v280 = vpop.f32.mrb[0].mxu0
        %281 = vmatprep.mubr.f32.mxu0 0.0
        %282 = vmatmul.mubr.f32.gmra.mrb[0].mxu0 %v168
        %v283 = vpop.f32.mrb[0].mxu0
        %v284 = vadd.f32 0.0, %v283
        %v285 = vpop.f32.mrb[0].mxu0
        %286 = vmatprep.mubr.f32.mxu0 0.0
        %287 = vmatmul.mubr.f32.gmra.mrb[0].mxu0 %v171
        %v288 = vpop.f32.mrb[0].mxu0
        %v289 = vadd.f32 0.0, %v288
        %v290 = vpop.f32.mrb[0].mxu0
        %291 = vmatprep.mubr.f32.mxu0 0.0
        %292 = vmatmul.mubr.f32.gmra.mrb[0].mxu0 %v174
        %v293 = vpop.f32.mrb[0].mxu0
        %v294 = vadd.f32 0.0, %v293
        %v295 = vpop.f32.mrb[0].mxu0
        %296 = vmatprep.mubr.f32.mxu0 0.0
        %297 = vmatmul.mubr.f32.gmra.mrb[0].mxu0 %v177
        %v298 = vpop.f32.mrb[0].mxu0
        %v299 = vadd.f32 0.0, %v298
        %v300 = vpop.f32.mrb[0].mxu0
        %301 = vmatprep.mubr.f32.mxu0 0.0
        %302 = vmatmul.mubr.f32.gmra.mrb[0].mxu0 %v180
        %v303 = vpop.f32.mrb[0].mxu0
        %v304 = vadd.f32 0.0, %v303
        %v305 = vpop.f32.mrb[0].mxu0
        %306 = vmatprep.mubr.f32.mxu0 0.0
        %307 = vmatmul.mubr.f32.gmra.mrb[0].mxu0 %v183
        %v308 = vpop.f32.mrb[0].mxu0
        %v309 = vadd.f32 0.0, %v308
        %v310 = vpop.f32.mrb[0].mxu0
        %311 = vmatprep.mubr.f32.mxu0 0.0
        %312 = vmatmul.mubr.f32.gmra.mrb[0].mxu0 %v186
        %v313 = vpop.f32.mrb[0].mxu0
        %v314 = vadd.f32 0.0, %v313
        %v315 = vpop.f32.mrb[0].mxu0
        %316 = vmatprep.mubr.f32.mxu0 0.0
        %317 = vmatmul.mubr.f32.gmra.mrb[0].mxu0 %v189
        %v318 = vpop.f32.mrb[0].mxu0
        %v319 = vadd.f32 0.0, %v318
        %v320 = vpop.f32.mrb[0].mxu0
        %321 = vmatprep.mubr.f32.mxu0 0.0
        %322 = vmatmul.mubr.f32.gmra.mrb[0].mxu0 %v192
        %v323 = vpop.f32.mrb[0].mxu0
        %v324 = vadd.f32 0.0, %v323
        %v325 = vpop.f32.mrb[0].mxu0
        %326 = vmatprep.mubr.f32.mxu0 0.0
        %327 = vmatmul.mubr.f32.gmra.mrb[0].mxu0 %v195
        %v328 = vpop.f32.mrb[0].mxu0
        %v329 = vadd.f32 0.0, %v328
        %v330 = vpop.f32.mrb[0].mxu0
        %331 = vmatprep.mubr.f32.mxu0 0.0
        %332 = vmatmul.mubr.f32.gmra.mrb[0].mxu0 %v198
        %v333 = vpop.f32.mrb[0].mxu0
        %v334 = vadd.f32 0.0, %v333
        %v335 = vpop.f32.mrb[0].mxu0
        %336 = vmatprep.mubr.f32.mxu0 0.0
        %337 = vmatmul.mubr.f32.gmra.mrb[0].mxu0 %v201
        %v338 = vpop.f32.mrb[0].mxu0
        %v339 = vadd.f32 0.0, %v338
        %v340 = vpop.f32.mrb[0].mxu0
        %341 = vmatprep.mubr.f32.mxu0 0.0
        %342 = vmatmul.mubr.f32.gmra.mrb[0].mxu0 %v204
        %v343 = vpop.f32.mrb[0].mxu0
        %v344 = vadd.f32 0.0, %v343
        %v345 = vpop.f32.mrb[0].mxu0
        %346 = vmatprep.mubr.f32.mxu0 0.0
        %347 = vmatmul.mubr.f32.gmra.mrb[0].mxu0 %v207
        %v348 = vpop.f32.mrb[0].mxu0
        %v349 = vadd.f32 0.0, %v348
        %v350 = vpop.f32.mrb[0].mxu0
        %351 = vmatprep.mubr.f32.mxu0 0.0
        %352 = vmatmul.mubr.f32.gmra.mrb[0].mxu0 %v210
        %v353 = vpop.f32.mrb[0].mxu0
        %v354 = vadd.f32 0.0, %v353
        %v355 = vpop.f32.mrb[0].mxu0
        %356 = vdwg.mxu0
        %357 = vst [vmem:[%s137] sm:$0xff] %v279
        %358 = vst [vmem:[%s137 + $0x8] sm:$0xff] %v284
        %359 = vst [vmem:[%s137 + $0x10] sm:$0xff] %v289
        %360 = vst [vmem:[%s137 + $0x18] sm:$0xff] %v294
        %361 = vst [vmem:[%s137 + $0x20] sm:$0xff] %v299
        %362 = vst [vmem:[%s137 + $0x28] sm:$0xff] %v304
        %363 = vst [vmem:[%s137 + $0x30] sm:$0xff] %v309
        %364 = vst [vmem:[%s137 + $0x38] sm:$0xff] %v314
        %365 = vst [vmem:[%s137 + $0x40] sm:$0xff] %v319
        %366 = vst [vmem:[%s137 + $0x48] sm:$0xff] %v324
        %367 = vst [vmem:[%s137 + $0x50] sm:$0xff] %v329
        %368 = vst [vmem:[%s137 + $0x58] sm:$0xff] %v334
        %369 = vst [vmem:[%s137 + $0x60] sm:$0xff] %v339
        %370 = vst [vmem:[%s137 + $0x68] sm:$0xff] %v344
        %371 = vst [vmem:[%s137 + $0x70] sm:$0xff] %v349
        %372 = vst [vmem:[%s137 + $0x78] sm:$0xff] %v354
        %s373 = sand.u32 %s71, 1
        %s374 = scalar_lea.sflag [#allocation3], %s373
        %s375 = sand.u32 %s71, 1
        %s376 = smul.addr %s375, 128
        %s377 = scalar_lea.vmem [#allocation2], %s376
        // Predicated region
        $region29: #{tpu_custom_call.1} parent=27 // pred_check
          %p378 = pneg %p81
        $region30: #{tpu_custom_call.1} parent=27 // pred_check_branch
          %380 = sbr.rel (%p378) target = $region32
        $region31: #{tpu_custom_call.1} parent=27 // pred_region
          %s381 = smul.u32 16, %s16
          %s383 = ssub.s32 2048, 2048
          %384 = vsyncadd %s374, %s383
          %s385 = smul.addr %s381, 128
          %s386 = scalar_lea.hbm %s2, %s385
          %s387 = sshll.u32 %s377, 4
          %s388 = int_to_ptr.vmem [resolvable:$true] %s387
          %393 = dma.vmem_to_hbm [thread:$0]  %s388, 2048, %s386, %s374, 128, 128, 8
        $region32: #{tpu_custom_call.1} parent=27 // pred_fallthru
          _
      $region28: #{tpu_custom_call.1} parent=5 // pred_fallthru
        _
      %p394 = scmp.le.s32.totalorder 2, %s11
      // Predicated region
      $region33: #{tpu_custom_call.1} parent=5 // pred_check
        %p395 = pneg %p394
      $region34: #{tpu_custom_call.1} parent=5 // pred_check_branch
        %397 = sbr.rel (%p395) target = $region36
      $region35: #{tpu_custom_call.1} parent=5 // pred_region
        %s398 = ssub.s32 %s11, 2
        // Predicated region
        $region37: #{tpu_custom_call.1} parent=35 // pred_check
          %p399 = pneg %p87
        $region38: #{tpu_custom_call.1} parent=35 // pred_check_branch
          %401 = sbr.rel (%p399) target = $region40
        $region39: #{tpu_custom_call.1} parent=35 // pred_region
          %s402 = sand.u32 %s72, 1
          %s403 = scalar_lea.sflag [#allocation3], %s402
          %s404 = sand.u32 %s72, 1
          %s405 = smul.addr %s404, 128
          %s406 = scalar_lea.vmem [#allocation2], %s405
          %407 = dma.done %s403, 2048
        $region40: #{tpu_custom_call.1} parent=35 // pred_fallthru
          _
      $region36: #{tpu_custom_call.1} parent=5 // pred_fallthru
        _
    $region6: #{tpu_custom_call.1} parent=1 // loop_footer
      %s15 = sadd.s32 1, %s11
    $region7: #{tpu_custom_call.1} parent=1 // loop_footer_branch
      %10 = sbr.rel target = $region3
    $region8: #{tpu_custom_call.1} parent=1 // loop_exit
      _
    %408 = vsyncpa [#allocation3], 1
    %s409 = scalar_lea.sflag [#allocation3], 1
    %410 = vsyncpa %s409, 1

</llo_original>
